<compile_context>
chip_gen: v7x
topology: tpu7x:2x2x1
jax: 0.10.0
libtpu: 0.0.40
codegen_flags: <defaults>
</compile_context>

<pallas_src>
import functools

import jax
import jax.numpy as jnp
from jax.experimental import pallas as pl
from jax.experimental.pallas import tpu as pltpu


# ---------------------------------------------------------------------------
# Pallas kernel: one grid step handles Bn images packed into the lane axis.
# ---------------------------------------------------------------------------
def _sk_kernel(p_ref, w_ref, hp_ref, v_ref, *, cout, inner, bn, hw):
    lanes = bn * hw
    inv_hw = 1.0 / hw
    co = cout

    p = p_ref[0]                                  # (2K, Bn*HW)  bf16
    hp = hp_ref[...]                              # packed small params, f32

    # static slices out of the packed parameter array
    wcf = hp[:inner, 0:co]                        # (inner, Cout)  compact weight
    bcf = hp[:inner, co:co + 1]                   # (inner, 1)     compact bias
    wab = hp[:2 * co, co + 1:co + 1 + inner]      # (2Cout, inner) select_a|b weight
    bab = hp[:2 * co, co + 1 + inner:co + 2 + inner]   # (2Cout, 1)
    b12 = hp[:2 * co, co + 2 + inner:co + 3 + inner]   # (2Cout, 1) conv BN biases

    # merged split1|split2 conv: one block-diagonal MXU matmul + bias + ReLU
    big = jnp.dot(w_ref[...], p, preferred_element_type=jnp.float32) + b12
    big = jnp.maximum(big, 0.0)                   # (2Cout, Bn*HW) == [u1 ; u2]

    # per-image global average pool of (u1 + u2), without materializing u1+u2
    if bn == 1:
        pooled = jnp.sum(big, axis=-1, keepdims=True) * inv_hw        # (2Cout, 1)
    else:
        lane_i = jax.lax.broadcasted_iota(jnp.int32, (lanes, bn), 0)
        col_i = jax.lax.broadcasted_iota(jnp.int32, (lanes, bn), 1)
        in_img = (lane_i >= col_i * hw) & (lane_i < (col_i + 1) * hw)
        sel_t = jnp.where(in_img, inv_hw, 0.0)                        # (lanes, Bn)
        pooled = jnp.dot(big, sel_t, preferred_element_type=jnp.float32)  # (2Cout, Bn)
    s = pooled[:co] + pooled[co:]                 # (Cout, Bn)

    # compact 1x1 (BN folded) + ReLU, then fused select_a|select_b heads
    z = jnp.maximum(jnp.dot(wcf, s, preferred_element_type=jnp.float32) + bcf, 0.0)
    heads = jnp.dot(wab, z, preferred_element_type=jnp.float32) + bab      # (2Cout, Bn)

    # softmax over the 2-branch stack dimension (per channel, per image)
    ah = heads[:co]
    bh = heads[co:]
    m = jnp.maximum(ah, bh)
    ea = jnp.exp(ah - m)
    eb = jnp.exp(bh - m)
    inv = pl.reciprocal(ea + eb, approx=True)
    a = ea * inv                                  # (Cout, Bn)
    b = eb * inv

    if bn > 1:
        # broadcast per-image gains across that image's lane segment via MXU
        row_i = jax.lax.broadcasted_iota(jnp.int32, (bn, lanes), 0)
        lane_i = jax.lax.broadcasted_iota(jnp.int32, (bn, lanes), 1)
        sel = jnp.where((lane_i >= row_i * hw) & (lane_i < (row_i + 1) * hw),
                        1.0, 0.0)                                    # (Bn, lanes)
        a = jnp.dot(a, sel, preferred_element_type=jnp.float32)      # (Cout, lanes)
        b = jnp.dot(b, sel, preferred_element_type=jnp.float32)

    # weighted fusion; lane-dense (Cout, Bn*HW) store
    v_ref[0] = big[:co] * a + big[co:] * b


# ---------------------------------------------------------------------------
# Wrapper-side prep (im2col + weight folding + parameter packing) + pallas_call
# ---------------------------------------------------------------------------
def _im2col(x_nchw, *, dil, pad, stride, hout, wout):
    """(N, Cin, H, W) -> (N, 9*Cin, Hout*Wout); tap-major, cin-minor ordering."""
    n, cin, _, _ = x_nchw.shape
    xp = jnp.pad(x_nchw, ((0, 0), (0, 0), (pad, pad), (pad, pad)))
    cols = []
    for kh in range(3):
        for kw in range(3):
            h0 = kh * dil
            w0 = kw * dil
            sl = xp[:, :,
                    h0:h0 + (hout - 1) * stride + 1:stride,
                    w0:w0 + (wout - 1) * stride + 1:stride]
            cols.append(sl.reshape(n, cin, hout * wout))
    return jnp.concatenate(cols, axis=1)          # (N, 9*Cin, HW)


def _fold_conv_weight(w_hwio, scale, groups):
    """HWIO (3,3,cipg,Cout) + per-channel BN scale -> (Cout, 9*Cin), block-diag."""
    _, _, cipg, cout = w_hwio.shape
    cin = cipg * groups
    copg = cout // groups
    w_t = jnp.transpose(w_hwio, (3, 0, 1, 2)).reshape(cout, 9, cipg)
    w_t = w_t * scale.reshape(cout, 1, 1)
    if groups == 1:
        return w_t.reshape(cout, 9 * cin).astype(jnp.float32)
    out = jnp.zeros((cout, 9, cin), jnp.float32)
    for g in range(groups):
        out = out.at[g * copg:(g + 1) * copg, :, g * cipg:(g + 1) * cipg].set(
            w_t[g * copg:(g + 1) * copg])
    return out.reshape(cout, 9 * cin)


def _pick_bn(n, hw):
    """Smallest per-step batch making the lane axis a multiple of 128."""
    if hw % 128 == 0:
        return 1
    for bn in range(1, n + 1):
        if n % bn == 0 and (bn * hw) % 128 == 0:
            return bn
    return n


def selective_kernel_conv2d(x_nchw, params, *, stride, groups):
    (w1, g1s, g1b, w2, g2s, g2b, wc, gcs, gcb, wa, ba, wb, bb) = params
    n, cin, h, w = x_nchw.shape
    cout = w1.shape[-1]
    inner = wc.shape[-1]
    hout = (h - 1) // stride + 1
    wout = (w - 1) // stride + 1
    hw = hout * wout
    k = 9 * cin

    bn = _pick_bn(n, hw)
    g = n // bn
    lanes = bn * hw

    # --- im2col both branches, concatenated along K; bf16 MXU operands -------
    xb = x_nchw.astype(jnp.bfloat16)              # pure data movement afterwards
    p1 = _im2col(xb, dil=1, pad=1, stride=stride, hout=hout, wout=wout)
    p2 = _im2col(xb, dil=2, pad=2, stride=stride, hout=hout, wout=wout)
    p = jnp.concatenate([p1, p2], axis=1)         # (N, 2K, HW)
    # fold Bn images into the lane axis: (G, 2K, Bn*HW)
    p = (p.reshape(g, bn, 2 * k, hw)
          .transpose(0, 2, 1, 3)
          .reshape(g, 2 * k, lanes))

    # --- merged block-diagonal conv weight (BN scale folded), bf16 -----------
    w1f = _fold_conv_weight(w1, g1s, groups)      # (Cout, 9*Cin)
    w2f = _fold_conv_weight(w2, g2s, groups)
    wbig = jnp.zeros((2 * cout, 2 * k), jnp.float32)
    wbig = wbig.at[:cout, :k].set(w1f).at[cout:, k:].set(w2f)
    wbig = wbig.astype(jnp.bfloat16)

    # --- pack all small head params into ONE f32 array (single DMA stream) ---
    wcf = (wc.T * gcs.reshape(-1, 1)).astype(jnp.float32)               # (inner, Cout)
    wab = jnp.concatenate([wa.T, wb.T], axis=0).astype(jnp.float32)     # (2Cout, inner)
    bab_v = jnp.concatenate([ba.reshape(cout), bb.reshape(cout)]).astype(jnp.float32)
    b12_v = jnp.concatenate([g1b.reshape(cout), g2b.reshape(cout)]).astype(jnp.float32)
    rows = max(2 * cout, inner)
    cols = cout + inner + 3
    hp = jnp.zeros((rows, cols), jnp.float32)
    hp = hp.at[:inner, 0:cout].set(wcf)
    hp = hp.at[:inner, cout].set(gcb.reshape(inner).astype(jnp.float32))
    hp = hp.at[:2 * cout, cout + 1:cout + 1 + inner].set(wab)
    hp = hp.at[:2 * cout, cout + 1 + inner].set(bab_v)
    hp = hp.at[:2 * cout, cout + 2 + inner].set(b12_v)

    kernel = functools.partial(_sk_kernel, cout=cout, inner=inner, bn=bn, hw=hw)

    def full_spec(arr):
        nd = arr.ndim
        return pl.BlockSpec(arr.shape, lambda i, _nd=nd: (0,) * _nd)

    out = pl.pallas_call(
        kernel,
        out_shape=jax.ShapeDtypeStruct((g, cout, lanes), jnp.float32),
        grid=(g,),
        in_specs=[
            pl.BlockSpec((1, 2 * k, lanes), lambda i: (i, 0, 0)),
            full_spec(wbig),
            full_spec(hp),
        ],
        out_specs=pl.BlockSpec((1, cout, lanes), lambda i: (i, 0, 0)),
        compiler_params=pltpu.CompilerParams(
            dimension_semantics=("parallel",)),
    )(p, wbig, hp)

    # unfold the lane-packed batch and reshape back to NCHW (no transpose of HW)
    v = (out.reshape(g, cout, bn, hw)
            .transpose(0, 2, 1, 3)
            .reshape(n, cout, hout, wout))
    return v


# ---------------------------------------------------------------------------
# Parameter construction and pure-JAX reference (PyTorch forward, BN eval mode)
# ---------------------------------------------------------------------------
def make_params(key, in_channels, out_channels, groups, reduction_rate,
                default_channels=32):
    inner = max(out_channels // reduction_rate, default_channels)
    ks = jax.random.split(key, 16)
    eps = 1e-5

    def bn_fold(kg, kb, km, kv, c):
        gamma = 1.0 + 0.1 * jax.random.normal(kg, (1, c), jnp.float32)
        beta = 0.1 * jax.random.normal(kb, (1, c), jnp.float32)
        mean = 0.1 * jax.random.normal(km, (1, c), jnp.float32)
        var = jax.random.uniform(kv, (1, c), jnp.float32, 0.5, 1.5)
        scale = gamma / jnp.sqrt(var + eps)
        shift = beta - mean * scale
        return scale, shift

    cipg = in_channels // groups
    w1 = 0.1 * jax.random.normal(ks[0], (3, 3, cipg, out_channels), jnp.float32)
    w2 = 0.1 * jax.random.normal(ks[1], (3, 3, cipg, out_channels), jnp.float32)
    g1s, g1b = bn_fold(ks[2], ks[3], ks[4], ks[5], out_channels)
    g2s, g2b = bn_fold(ks[6], ks[7], ks[8], ks[9], out_channels)
    wc = 0.1 * jax.random.normal(ks[10], (out_channels, inner), jnp.float32)
    gcs, gcb = bn_fold(ks[11], ks[12], ks[13], ks[14], inner)
    kk = jax.random.split(ks[15], 4)
    wa = 0.1 * jax.random.normal(kk[0], (inner, out_channels), jnp.float32)
    ba = 0.1 * jax.random.normal(kk[1], (1, out_channels), jnp.float32)
    wb = 0.1 * jax.random.normal(kk[2], (inner, out_channels), jnp.float32)
    bb = 0.1 * jax.random.normal(kk[3], (1, out_channels), jnp.float32)
    return (w1, g1s, g1b, w2, g2s, g2b, wc, gcs, gcb, wa, ba, wb, bb)


def reference(x_nchw, params, *, stride, groups):
    (w1, g1s, g1b, w2, g2s, g2b, wc, gcs, gcb, wa, ba, wb, bb) = params
    x = jnp.transpose(x_nchw, (0, 2, 3, 1)).astype(jnp.float32)

    def conv(xx, w, dil, pad):
        return jax.lax.conv_general_dilated(
            xx, w, (stride, stride), ((pad, pad), (pad, pad)),
            rhs_dilation=(dil, dil),
            dimension_numbers=("NHWC", "HWIO", "NHWC"),
            feature_group_count=groups)

    u1 = jnp.maximum(conv(x, w1, 1, 1) * g1s + g1b, 0.0)
    u2 = jnp.maximum(conv(x, w2, 2, 2) * g2s + g2b, 0.0)
    u = u1 + u2
    s = jnp.mean(u, axis=(1, 2))                                   # (N, Cout)
    z = jnp.maximum(s @ wc * gcs + gcb, 0.0)                       # (N, inner)
    ac = z @ wa + ba
    bc = z @ wb + bb
    sm = jax.nn.softmax(jnp.stack([ac, bc]), axis=0)               # (2, N, Cout)
    a = sm[0][:, None, None, :]
    b = sm[1][:, None, None, :]
    v = u1 * a + u2 * b
    return jnp.transpose(v, (0, 3, 1, 2))


if __name__ == "__main__":
    key = jax.random.PRNGKey(0)

    configs = [
        # (in_channels, out_channels, stride, groups, reduction_rate, N, H, W)
        (4, 16, 1, 1, 4, 2, 16, 16),   # HW=256 -> Bn=1, grid=2 (megacore)
        (4, 16, 2, 2, 4, 2, 16, 16),   # HW=64  -> Bn=2 packed into 128 lanes
    ]

    for (cin, cout, stride, groups, red, n, h, w) in configs:
        kx, kp, key = jax.random.split(key, 3)
        x = jax.random.normal(kx, (n, cin, h, w), jnp.float32)
        params = make_params(kp, cin, cout, groups, red)

        out = selective_kernel_conv2d(x, params, stride=stride, groups=groups)
        out = jax.block_until_ready(out)

        ref = jax.block_until_ready(
            reference(x, params, stride=stride, groups=groups))
        hout = (h - 1) // stride + 1
        wout = (w - 1) // stride + 1
        assert out.shape == (n, cout, hout, wout), out.shape
        max_err = float(jnp.max(jnp.abs(out - ref)))
        # bf16 conv operands (f32 accumulation) -> bf16-level tolerance vs f32 ref
        assert max_err < 3e-2, f"mismatch vs reference: {max_err}"

    print("KERNEL_OK")
</pallas_src>

<mosaic_0001>
module attributes {stable_mosaic.version = 11 : i64} {
  func.func @_sk_kernel(%arg0: i32, %arg1: memref<1x72x256xbf16, #tpu.memory_space<vmem>>, %arg2: memref<32x72xbf16, #tpu.memory_space<vmem>>, %arg3: memref<32x51xf32, #tpu.memory_space<vmem>>, %arg4: memref<1x16x256xf32, #tpu.memory_space<vmem>>) attributes {dimension_semantics = [#tpu.dimension_semantics<parallel>], iteration_bounds = array<i64: 2>, scalar_prefetch = 0 : i64, scratch_operands = 0 : i64, tpu.core_type = #tpu.core_type<tc>, window_params = [{transform_indices = @transform_0, window_bounds = array<i64: 1, 72, 256>}, {pipeline_mode = #tpu.pipeline_mode<synchronous>, transform_indices = @transform_1, window_bounds = array<i64: 32, 72>}, {pipeline_mode = #tpu.pipeline_mode<synchronous>, transform_indices = @transform_2, window_bounds = array<i64: 32, 51>}, {transform_indices = @transform_3, window_bounds = array<i64: 1, 16, 256>}]} {
    %c0 = arith.constant 0 : index
    %c0_0 = arith.constant 0 : index
    %c0_1 = arith.constant 0 : index
    %0 = vector.load %arg1[%c0, %c0_0, %c0_1] : memref<1x72x256xbf16, #tpu.memory_space<vmem>>, vector<1x72x256xbf16>
    %1 = vector.shape_cast %0 : vector<1x72x256xbf16> to vector<72x256xbf16>
    %c0_2 = arith.constant 0 : index
    %c0_3 = arith.constant 0 : index
    %2 = vector.load %arg3[%c0_2, %c0_3] : memref<32x51xf32, #tpu.memory_space<vmem>>, vector<32x51xf32>
    %3 = vector.extract_strided_slice %2 {offsets = [0, 0], sizes = [32, 16], strides = [1, 1]} : vector<32x51xf32> to vector<32x16xf32>
    %4 = vector.extract_strided_slice %2 {offsets = [0, 16], sizes = [32, 1], strides = [1, 1]} : vector<32x51xf32> to vector<32x1xf32>
    %5 = vector.extract_strided_slice %2 {offsets = [0, 17], sizes = [32, 32], strides = [1, 1]} : vector<32x51xf32> to vector<32x32xf32>
    %6 = vector.extract_strided_slice %2 {offsets = [0, 49], sizes = [32, 1], strides = [1, 1]} : vector<32x51xf32> to vector<32x1xf32>
    %7 = vector.extract_strided_slice %2 {offsets = [0, 50], sizes = [32, 1], strides = [1, 1]} : vector<32x51xf32> to vector<32x1xf32>
    %c0_4 = arith.constant 0 : index
    %c0_5 = arith.constant 0 : index
    %8 = vector.load %arg2[%c0_4, %c0_5] : memref<32x72xbf16, #tpu.memory_space<vmem>>, vector<32x72xbf16>
    %cst = arith.constant dense<0.000000e+00> : vector<32x256xf32>
    %9 = tpu.matmul %8, %1, %cst {dimension_numbers = #tpu.dot_dimension_numbers<[1], [0], [0], [1], [0, 0, 1, 1], [], []>} : vector<32x72xbf16>, vector<72x256xbf16>, vector<32x256xf32> -> vector<32x256xf32>
    %10 = vector.broadcast %7 : vector<32x1xf32> to vector<32x256xf32>
    %11 = arith.addf %9, %10 : vector<32x256xf32>
    %cst_6 = arith.constant 0.000000e+00 : f32
    %12 = vector.broadcast %cst_6 : f32 to vector<32x256xf32>
    %13 = arith.maximumf %11, %12 : vector<32x256xf32>
    %cst_7 = arith.constant dense<0.000000e+00> : vector<32xf32>
    %14 = vector.multi_reduction <add>, %13, %cst_7 [1] : vector<32x256xf32> to vector<32xf32>
    %15 = vector.shape_cast %14 : vector<32xf32> to vector<32x1xf32>
    %cst_8 = arith.constant 3.906250e-03 : f32
    %16 = vector.broadcast %cst_8 : f32 to vector<32x1xf32>
    %17 = arith.mulf %15, %16 : vector<32x1xf32>
    %18 = vector.extract_strided_slice %17 {offsets = [0, 0], sizes = [16, 1], strides = [1, 1]} : vector<32x1xf32> to vector<16x1xf32>
    %19 = vector.extract_strided_slice %17 {offsets = [16, 0], sizes = [16, 1], strides = [1, 1]} : vector<32x1xf32> to vector<16x1xf32>
    %20 = arith.addf %18, %19 : vector<16x1xf32>
    %cst_9 = arith.constant dense<0.000000e+00> : vector<32x1xf32>
    %21 = tpu.matmul %3, %20, %cst_9 {dimension_numbers = #tpu.dot_dimension_numbers<[1], [0], [0], [1], [0, 0, 1, 1], [], []>} : vector<32x16xf32>, vector<16x1xf32>, vector<32x1xf32> -> vector<32x1xf32>
    %22 = arith.addf %21, %4 : vector<32x1xf32>
    %cst_10 = arith.constant 0.000000e+00 : f32
    %23 = vector.broadcast %cst_10 : f32 to vector<32x1xf32>
    %24 = arith.maximumf %22, %23 : vector<32x1xf32>
    %cst_11 = arith.constant dense<0.000000e+00> : vector<32x1xf32>
    %25 = tpu.matmul %5, %24, %cst_11 {dimension_numbers = #tpu.dot_dimension_numbers<[1], [0], [0], [1], [0, 0, 1, 1], [], []>} : vector<32x32xf32>, vector<32x1xf32>, vector<32x1xf32> -> vector<32x1xf32>
    %26 = arith.addf %25, %6 : vector<32x1xf32>
    %27 = vector.extract_strided_slice %26 {offsets = [0, 0], sizes = [16, 1], strides = [1, 1]} : vector<32x1xf32> to vector<16x1xf32>
    %28 = vector.extract_strided_slice %26 {offsets = [16, 0], sizes = [16, 1], strides = [1, 1]} : vector<32x1xf32> to vector<16x1xf32>
    %29 = arith.maximumf %27, %28 : vector<16x1xf32>
    %30 = arith.subf %27, %29 : vector<16x1xf32>
    %31 = math.exp %30 : vector<16x1xf32>
    %32 = arith.subf %28, %29 : vector<16x1xf32>
    %33 = math.exp %32 : vector<16x1xf32>
    %34 = arith.addf %31, %33 : vector<16x1xf32>
    %35 = tpu.reciprocal %34 {approx = true} : vector<16x1xf32> -> vector<16x1xf32>
    %36 = arith.mulf %31, %35 : vector<16x1xf32>
    %37 = arith.mulf %33, %35 : vector<16x1xf32>
    %38 = vector.extract_strided_slice %13 {offsets = [0, 0], sizes = [16, 256], strides = [1, 1]} : vector<32x256xf32> to vector<16x256xf32>
    %39 = vector.broadcast %36 : vector<16x1xf32> to vector<16x256xf32>
    %40 = arith.mulf %38, %39 : vector<16x256xf32>
    %41 = vector.extract_strided_slice %13 {offsets = [16, 0], sizes = [16, 256], strides = [1, 1]} : vector<32x256xf32> to vector<16x256xf32>
    %42 = vector.broadcast %37 : vector<16x1xf32> to vector<16x256xf32>
    %43 = arith.mulf %41, %42 : vector<16x256xf32>
    %44 = arith.addf %40, %43 : vector<16x256xf32>
    %c0_12 = arith.constant 0 : index
    %c0_13 = arith.constant 0 : index
    %c0_14 = arith.constant 0 : index
    %45 = vector.load %arg4[%c0_12, %c0_13, %c0_14] : memref<1x16x256xf32, #tpu.memory_space<vmem>>, vector<1x16x256xf32>
    %46 = vector.shape_cast %45 : vector<1x16x256xf32> to vector<16x256xf32>
    %47 = vector.shape_cast %44 : vector<16x256xf32> to vector<1x16x256xf32>
    tpu.vector_store %arg4[%c0_12, %c0_13, %c0_14], %47 {strides = array<i32>} : memref<1x16x256xf32, #tpu.memory_space<vmem>>, vector<1x16x256xf32>,
    return
  }
  func.func @transform_0(%arg0: i32) -> (i32, i32, i32) {
    %c0_i32 = arith.constant 0 : i32
    %c0_i32_0 = arith.constant 0 : i32
    %c0_i32_1 = arith.constant 0 : i32
    return %arg0, %c0_i32, %c0_i32_0 : i32, i32, i32
  }
  func.func @transform_1(%arg0: i32) -> (i32, i32) {
    %c0_i32 = arith.constant 0 : i32
    %c0_i32_0 = arith.constant 0 : i32
    %c0_i32_1 = arith.constant 0 : i32
    return %c0_i32, %c0_i32_0 : i32, i32
  }
  func.func @transform_2(%arg0: i32) -> (i32, i32) {
    %c0_i32 = arith.constant 0 : i32
    %c0_i32_0 = arith.constant 0 : i32
    %c0_i32_1 = arith.constant 0 : i32
    return %c0_i32, %c0_i32_0 : i32, i32
  }
  func.func @transform_3(%arg0: i32) -> (i32, i32, i32) {
    %c0_i32 = arith.constant 0 : i32
    %c0_i32_0 = arith.constant 0 : i32
    %c0_i32_1 = arith.constant 0 : i32
    return %arg0, %c0_i32, %c0_i32_0 : i32, i32, i32
  }
}

</mosaic_0001>

<llo_original>
// kernel: tpu_custom_call.1
$region0: #{tpu_custom_call.1}
  #allocation0 [shape = 'u32[]', space=smem, size = 0x4, offset = 0x4, fixed_abs, tag = 'smem constant byte address 0x4 - core index']
  #allocation1 [shape = 'u32[144,128]{1,0:T(1,128)}', space=vmem, size = 0x12000, scoped, tag = 'internal scratch']
  %s0 = inlined_call_operand.hbm [shape: bf16[2,72,256], index: 0, kind: input, shape index: {}]
  %s1 = inlined_call_operand.hbm [shape: bf16[32,72], index: 1, kind: input, shape index: {}]
  %s2 = inlined_call_operand.hbm [shape: f32[32,51], index: 2, kind: input, shape index: {}]
  %s3 = inlined_call_operand.hbm [shape: f32[2,16,256], index: 3, kind: output, shape index: {}]
  %s4 = sld [smem:[#allocation0]]
  $region57: #{tpu_custom_call.1} parent=0
    _
  %s6 = ssub.s32 1, %s4
  %s7 = scalar_select 0, %s6, %s4
  $region1: #{tpu_custom_call.1} parent=0
    #allocation2 [shape = 'u8[73728]{0}', space=vmem, size = 0x12000, scoped, tag = 'input window, operand 0']
    #allocation3 [shape = 's32[2]{0}', space=sflag, size = 0x8, scoped, tag = 'scoped memory for tpu_custom_call.1']
    #allocation4 [shape = 's32[2]{0}', space=sflag, size = 0x8, scoped, tag = 'scoped memory for tpu_custom_call.1']
    #allocation5 [shape = 'u8[8192]{0}', space=vmem, size = 0x2000, scoped, tag = 'input window, operand 1, single buffered']
    #allocation6 [shape = 's32[1]{0}', space=sflag, size = 0x4, scoped, tag = 'scoped memory for tpu_custom_call.1']
    #allocation7 [shape = 'u8[16384]{0}', space=vmem, size = 0x4000, scoped, tag = 'input window, operand 2, single buffered']
    #allocation8 [shape = 'u8[32768]{0}', space=vmem, size = 0x8000, scoped, tag = 'output window, operand 0']
    %8 = vsyncpa [#allocation3], 0
    %s9 = scalar_lea.sflag [#allocation3], 1
    %10 = vsyncpa %s9, 0
    %11 = vsyncpa [#allocation6], 0
    %12 = vsyncpa [#allocation4], 0
    %s13 = scalar_lea.sflag [#allocation4], 1
    %14 = vsyncpa %s13, 0
    loop: start=0, step=1, limit=4
    $region2: #{tpu_custom_call.1} parent=1 // loop_pre_header
      _
    $region3: #{tpu_custom_call.1} parent=1 // loop_header
      %s16 = sphi 0, %s20
      %p17 = scmp.ge.s32.totalorder %s16, 4
      %s26 = sphi 0, %s28
      %s29 = sphi 0, %s26
      %s30 = sphi 0, %s29
      %s46 = sphi 0, %s30
      %s50 = sphi 0, %s50
      %s52 = sphi 0, %s50
      %s53 = sphi 0, %s52
      %s67 = sphi 0, %s53
      %s71 = sphi 0, %s71
      %s73 = sphi 0, %s71
      %s74 = sphi 0, %s73
      %s88 = sphi 0, %s74
      %s94 = sphi 0, %s96
      %s97 = sphi 0, %s94
      %s98 = sphi 0, %s97
      %s114 = sphi 0, %s98
    $region4: #{tpu_custom_call.1} parent=1 // loop_header_branch
      %19 = sbr.rel (%p17) target = $region8
    $region5: #{tpu_custom_call.1} parent=1 // loop_body
      %s21 = ssub.s32 %s16, 1
      %s22 = ssub.s32 %s16, 2
      %s23 = sadd.s32 %s16, 1
      %s24 = ssub.s32 %s16, %s23
      %p25 = scmp.eq.s32.totalorder %s24, 0
      %s27 = sadd.s32 %s26, 1
      %s28 = scalar_select %p25, %s26, %s27
      %p31 = pneg %p25
      %p32 = scmp.eq.s32.totalorder %s16, 1
      %p33 = por %p31, %p32
      %p34 = scmp.ne.s32.totalorder %s26, %s29
      %p35 = scmp.eq.s32.totalorder %s16, 0
      %p36 = por %p34, %p35
      %p37 = scmp.ne.s32.totalorder %s26, %s29
      %p38 = scmp.eq.s32.totalorder %s21, 1
      %p39 = por %p37, %p38
      %p40 = scmp.ne.s32.totalorder %s29, %s30
      %p41 = scmp.eq.s32.totalorder %s21, 0
      %p42 = por %p40, %p41
      %p43 = scmp.ne.s32.totalorder %s29, %s30
      %p44 = scmp.eq.s32.totalorder %s22, 1
      %p45 = por %p43, %p44
      %p47 = scmp.ne.s32.totalorder %s30, %s46
      %p48 = scmp.eq.s32.totalorder %s22, 0
      %p49 = por %p47, %p48
      %s51 = sadd.s32 %s50, 1
      %p54 = scmp.eq.s32.totalorder %s16, 1
      %p55 = scmp.ne.s32.totalorder %s50, %s52
      %p56 = scmp.eq.s32.totalorder %s16, 0
      %p57 = por %p55, %p56
      %p58 = scmp.ne.s32.totalorder %s50, %s52
      %p59 = scmp.eq.s32.totalorder %s21, 1
      %p60 = por %p58, %p59
      %p61 = scmp.ne.s32.totalorder %s52, %s53
      %p62 = scmp.eq.s32.totalorder %s21, 0
      %p63 = por %p61, %p62
      %p64 = scmp.ne.s32.totalorder %s52, %s53
      %p65 = scmp.eq.s32.totalorder %s22, 1
      %p66 = por %p64, %p65
      %p68 = scmp.ne.s32.totalorder %s53, %s67
      %p69 = scmp.eq.s32.totalorder %s22, 0
      %p70 = por %p68, %p69
      %s72 = sadd.s32 %s71, 1
      %p75 = scmp.eq.s32.totalorder %s16, 1
      %p76 = scmp.ne.s32.totalorder %s71, %s73
      %p77 = scmp.eq.s32.totalorder %s16, 0
      %p78 = por %p76, %p77
      %p79 = scmp.ne.s32.totalorder %s71, %s73
      %p80 = scmp.eq.s32.totalorder %s21, 1
      %p81 = por %p79, %p80
      %p82 = scmp.ne.s32.totalorder %s73, %s74
      %p83 = scmp.eq.s32.totalorder %s21, 0
      %p84 = por %p82, %p83
      %p85 = scmp.ne.s32.totalorder %s73, %s74
      %p86 = scmp.eq.s32.totalorder %s22, 1
      %p87 = por %p85, %p86
      %p89 = scmp.ne.s32.totalorder %s74, %s88
      %p90 = scmp.eq.s32.totalorder %s22, 0
      %p91 = por %p89, %p90
      %s92 = ssub.s32 %s16, %s23
      %p93 = scmp.eq.s32.totalorder %s92, 0
      %s95 = sadd.s32 %s94, 1
      %s96 = scalar_select %p93, %s94, %s95
      %p99 = pneg %p93
      %p100 = scmp.eq.s32.totalorder %s16, 1
      %p101 = por %p99, %p100
      %p102 = scmp.ne.s32.totalorder %s94, %s97
      %p103 = scmp.eq.s32.totalorder %s16, 0
      %p104 = por %p102, %p103
      %p105 = scmp.ne.s32.totalorder %s94, %s97
      %p106 = scmp.eq.s32.totalorder %s21, 1
      %p107 = por %p105, %p106
      %p108 = scmp.ne.s32.totalorder %s97, %s98
      %p109 = scmp.eq.s32.totalorder %s21, 0
      %p110 = por %p108, %p109
      %p111 = scmp.ne.s32.totalorder %s97, %s98
      %p112 = scmp.eq.s32.totalorder %s22, 1
      %p113 = por %p111, %p112
      %p115 = scmp.ne.s32.totalorder %s98, %s114
      %p116 = scmp.eq.s32.totalorder %s22, 0
      %p117 = por %p115, %p116
      %p118 = scmp.le.s32.totalorder 1, %s16
      %p119 = scmp.lt.s32.totalorder %s16, 3
      %p120 = pnand %p118, %p119
      %p121 = pneg %p120
      // Predicated region
      $region9: #{tpu_custom_call.1} parent=5 // pred_check
        _
      $region10: #{tpu_custom_call.1} parent=5 // pred_check_branch
        %123 = sbr.rel (%p120) target = $region12
      $region11: #{tpu_custom_call.1} parent=5 // pred_region
        %s124 = ssub.s32 %s16, 1
        // Predicated region
        $region13: #{tpu_custom_call.1} parent=11 // pred_check
          %p125 = pneg %p63
        $region14: #{tpu_custom_call.1} parent=11 // pred_check_branch
          %127 = sbr.rel (%p125) target = $region16
        $region15: #{tpu_custom_call.1} parent=11 // pred_region
          %s129 = ssub.s32 256, 256
          %130 = vsyncadd [#allocation6], %s129
          %s131 = sshll.u32 [#allocation5], 4
          %s132 = int_to_ptr.vmem [resolvable:$true] %s131
          %137 = dma.hbm_to_vmem [thread:$0]  %s1, 256, %s132, [#allocation6], 64, 64, 4
        $region16: #{tpu_custom_call.1} parent=11 // pred_fallthru
          _
        // Predicated region
        $region17: #{tpu_custom_call.1} parent=11 // pred_check
          %p138 = pneg %p84
        $region18: #{tpu_custom_call.1} parent=11 // pred_check_branch
          %140 = sbr.rel (%p138) target = $region20
        $region19: #{tpu_custom_call.1} parent=11 // pred_region
          %s142 = ssub.s32 512, 512
          %143 = vsyncadd [#allocation6], %s142
          %s144 = sshll.u32 [#allocation7], 4
          %s145 = int_to_ptr.vmem [resolvable:$true] %s144
          %150 = dma.hbm_to_vmem [thread:$0]  %s2, 512, %s145, [#allocation6], 128, 128, 8
        $region20: #{tpu_custom_call.1} parent=11 // pred_fallthru
          _
      $region12: #{tpu_custom_call.1} parent=5 // pred_fallthru
        _
      %p151 = scmp.lt.s32.totalorder %s16, 2
      // Predicated region
      $region21: #{tpu_custom_call.1} parent=5 // pred_check
        %p152 = pneg %p151
      $region22: #{tpu_custom_call.1} parent=5 // pred_check_branch
        %154 = sbr.rel (%p152) target = $region24
      $region23: #{tpu_custom_call.1} parent=5 // pred_region
        // Predicated region
        $region25: #{tpu_custom_call.1} parent=23 // pred_check
          %p155 = pneg %p36
        $region26: #{tpu_custom_call.1} parent=23 // pred_check_branch
          %157 = sbr.rel (%p155) target = $region28
        $region27: #{tpu_custom_call.1} parent=23 // pred_region
          %s158 = sand.u32 %s26, 1
          %s159 = scalar_lea.sflag [#allocation3], %s158
          %s160 = sand.u32 %s26, 1
          %s161 = smul.addr %s160, 72
          %s162 = scalar_lea.vmem [#allocation2], %s161
          %s164 = ssub.s32 1152, 1152
          %165 = vsyncadd %s159, %s164
          %s166 = smul.addr %s16, 18
          %s167 = smul.addr %s166, 64
          %s168 = scalar_lea.hbm %s0, %s167
          %s169 = sshll.u32 %s162, 4
          %s170 = int_to_ptr.vmem [resolvable:$true] %s169
          %175 = dma.hbm_to_vmem [thread:$0]  %s168, 1152, %s170, %s159, 128, 128, 8
        $region28: #{tpu_custom_call.1} parent=23 // pred_fallthru
          _
      $region24: #{tpu_custom_call.1} parent=5 // pred_fallthru
        _
      %p176 = scmp.le.s32.totalorder 1, %s16
      %p177 = scmp.lt.s32.totalorder %s16, 3
      %p178 = pnand %p176, %p177
      %p179 = pneg %p178
      // Predicated region
      $region29: #{tpu_custom_call.1} parent=5 // pred_check
        _
      $region30: #{tpu_custom_call.1} parent=5 // pred_check_branch
        %181 = sbr.rel (%p178) target = $region32
      $region31: #{tpu_custom_call.1} parent=5 // pred_region
        %s182 = ssub.s32 %s16, 1
        %s183 = sand.u32 %s29, 1
        %s184 = scalar_lea.sflag [#allocation3], %s183
        %s185 = sand.u32 %s29, 1
        %s186 = smul.addr %s185, 72
        %s187 = scalar_lea.vmem [#allocation2], %s186
        // Predicated region
        $region33: #{tpu_custom_call.1} parent=31 // pred_check
          %p188 = pneg %p42
        $region34: #{tpu_custom_call.1} parent=31 // pred_check_branch
          %190 = sbr.rel (%p188) target = $region36
        $region35: #{tpu_custom_call.1} parent=31 // pred_region
          %191 = dma.done %s184, 1152
        $region36: #{tpu_custom_call.1} parent=31 // pred_fallthru
          _
        // Predicated region
        $region37: #{tpu_custom_call.1} parent=31 // pred_check
          %p192 = pneg %p63
        $region38: #{tpu_custom_call.1} parent=31 // pred_check_branch
          %194 = sbr.rel (%p192) target = $region40
        $region39: #{tpu_custom_call.1} parent=31 // pred_region
          %195 = dma.done [#allocation6], 256
        $region40: #{tpu_custom_call.1} parent=31 // pred_fallthru
          _
        // Predicated region
        $region41: #{tpu_custom_call.1} parent=31 // pred_check
          %p196 = pneg %p84
        $region42: #{tpu_custom_call.1} parent=31 // pred_check_branch
          %198 = sbr.rel (%p196) target = $region44
        $region43: #{tpu_custom_call.1} parent=31 // pred_region
          %199 = dma.done [#allocation6], 512
        $region44: #{tpu_custom_call.1} parent=31 // pred_fallthru
          _
        %s200 = sand.u32 %s29, 1
        %s201 = scalar_lea.sflag [#allocation3], %s200
        %s202 = sand.u32 %s29, 1
        %s203 = smul.addr %s202, 72
        %s204 = scalar_lea.vmem [#allocation2], %s203
        %p205 = pneg %p42
        %p206 = pneg %p39
        %p207 = pneg %p63
        %p208 = pneg %p60
        %p209 = pneg %p84
        %p210 = pneg %p81
        %p211 = pneg %p110
        %p212 = pneg %p107
        %s213 = sand.u32 %s97, 1
        %s214 = scalar_lea.sflag [#allocation4], %s213
        %s215 = sand.u32 %s97, 1
        %s216 = smul.addr %s215, 32
        %s217 = scalar_lea.vmem [#allocation8], %s216
        %v219 = vld [vmem:[%s187] sm:$0xff]
        %v220 = vld [vmem:[%s187 + $0x8] sm:$0xff]
        %v221 = vld [vmem:[%s187 + $0x10] sm:$0xff]
        %v222 = vld [vmem:[%s187 + $0x18] sm:$0xff]
        %v223 = vld [vmem:[%s187 + $0x20] sm:$0xff]
        %v224 = vld [vmem:[%s187 + $0x28] sm:$0xff]
        %v225 = vld [vmem:[%s187 + $0x30] sm:$0xff]
        %v226 = vld [vmem:[%s187 + $0x38] sm:$0xff]
        %v227 = vld [vmem:[%s187 + $0x40] sm:$0xff]
        %v228 = vld [vmem:[#allocation7] sm:$0xff]
        %v229 = vld [vmem:[#allocation7 + $0x8] sm:$0xff]
        %v230 = vld [vmem:[#allocation7 + $0x10] sm:$0xff]
        %v231 = vld [vmem:[#allocation7 + $0x18] sm:$0xff]
        %v232 = vld [vmem:[#allocation5] sm:$0xf]
        %v233 = vld [vmem:[#allocation5 + $0x4] sm:$0xf]
        %v234 = vld [vmem:[#allocation5 + $0x8] sm:$0xf]
        %v235 = vld [vmem:[#allocation5 + $0xc] sm:$0xf]
        %237 = vset.pattern.permute.xlu0 50
        %238 = vperm.xlu0 %237, %v228
        %v239 = vpop.permute.xlu0 %238
        %242 = vset.pattern.permute.xlu0 50
        %243 = vperm.xlu0 %242, %v229
        %v244 = vpop.permute.xlu0 %243
        %247 = vset.pattern.permute.xlu0 50
        %248 = vperm.xlu0 %247, %v230
        %v249 = vpop.permute.xlu0 %248
        %252 = vset.pattern.permute.xlu0 50
        %253 = vperm.xlu0 %252, %v231
        %v254 = vpop.permute.xlu0 %253
        %v260 = vunpack.c.l.b16 %v232
        %v261 = vunpack.c.l.b16 %v233
        %v262 = vunpack.c.l.b16 %v234
        %v263 = vunpack.c.l.b16 %v235
        %v264 = vpack.c.b16 %v261, %v260
        %v265 = vpack.c.b16 %v263, %v262
        %v275 = vunpack.c.l.b16 %v219
        %v276 = vunpack.c.h.b16 %v219
        %v277 = vunpack.c.l.b16 %v220
        %v278 = vunpack.c.h.b16 %v220
        %v279 = vunpack.c.l.b16 %v221
        %v280 = vunpack.c.h.b16 %v221
        %v281 = vunpack.c.l.b16 %v222
        %v282 = vunpack.c.h.b16 %v222
        %v283 = vunpack.c.l.b16 %v223
        %v284 = vunpack.c.h.b16 %v223
        %v285 = vunpack.c.l.b16 %v224
        %v286 = vunpack.c.h.b16 %v224
        %v287 = vunpack.c.l.b16 %v225
        %v288 = vunpack.c.h.b16 %v225
        %v289 = vunpack.c.l.b16 %v226
        %v290 = vunpack.c.h.b16 %v226
        %v291 = vunpack.c.l.b16 %v227
        %v292 = vunpack.c.h.b16 %v227
        %v293 = vpack.c.b16 %v277, %v275
        %v294 = vpack.c.b16 %v278, %v276
        %v295 = vpack.c.b16 %v281, %v279
        %v296 = vpack.c.b16 %v282, %v280
        %v297 = vpack.c.b16 %v285, %v283
        %v298 = vpack.c.b16 %v286, %v284
        %v299 = vpack.c.b16 %v289, %v287
        %v300 = vpack.c.b16 %v290, %v288
        %v301 = vpack.c.b16 %v291, %v291
        %v302 = vpack.c.b16 %v292, %v292
        %vm311 = vcmask 588800
        %v313 = vsel %vm311, %v264, 0
        %v316 = vsel %vm311, %v265, 0
        %vm318 = vcmask 1043456
        %v320 = vsel %vm318, %v301, 0
        %v323 = vsel %vm318, %v302, 0
        %325 = vmatprep.subr.bf16.mxu0 %v294
        %326 = vmatpush1.bf16.msra.mxu0 %v293
        %327 = vmatprep.subr.bf16.mxu0 %v296
        %328 = vmatpush1.bf16.msra.mxu0 %v295
        %329 = vmatprep.subr.bf16.mxu0 %v298
        %330 = vmatpush1.bf16.msra.mxu0 %v297
        %331 = vmatprep.subr.bf16.mxu0 %v300
        %332 = vmatpush1.bf16.msra.mxu0 %v299
        %333 = vmatprep.subr.bf16.mxu0 %v323
        %334 = vmatpush1.bf16.msra.mxu0 %v320
        %335 = vmatprep.subr.bf16.mxu0 0
        %336 = vmatpush1.bf16.msra.mxu0 0
        %337 = vmatprep.subr.bf16.mxu0 0
        %338 = vmatpush1.bf16.msra.mxu0 0
        %339 = vmatprep.subr.bf16.mxu0 0
        %340 = vmatpush1.bf16.msra.mxu0 0
        %341 = vmatprep.subr.bf16.mxu0 0
        %342 = vmatpush1.bf16.msra.mxu0 0
        %343 = vmatprep.subr.bf16.mxu0 0
        %344 = vmatpush1.bf16.msra.mxu0 0
        %345 = vmatprep.subr.bf16.mxu0 0
        %346 = vmatpush1.bf16.msra.mxu0 0
        %347 = vmatprep.subr.bf16.mxu0 0
        %348 = vmatpush1.bf16.msra.mxu0 0
        %349 = vmatprep.subr.bf16.mxu0 0
        %350 = vmatpush1.bf16.msra.mxu0 0
        %351 = vmatprep.subr.bf16.mxu0 0
        %352 = vmatpush1.bf16.msra.mxu0 0
        %353 = vmatprep.subr.bf16.mxu0 0
        %354 = vmatpush1.bf16.msra.mxu0 0
        %355 = vmatprep.subr.bf16.mxu0 0
        %356 = vmatpush1.bf16.msra.mxu0 0
        %357 = vmatprep.mubr.bf16.mxu0 0
        %358 = vmatmul.mubr.bf16.gmra.mrb[0].mxu0 %v313
        %v359 = vpop.f32.mrb[0].mxu0
        %v360 = vadd.f32 %v239, %v359
        %v361 = vpop.f32.mrb[0].mxu0
        %v362 = vadd.f32 %v239, %v361
        %v363 = vpop.f32.mrb[0].mxu0
        %v364 = vadd.f32 %v244, %v363
        %v365 = vpop.f32.mrb[0].mxu0
        %v366 = vadd.f32 %v244, %v365
        %367 = vmatprep.mubr.bf16.mxu0 0
        %368 = vmatmul.mubr.bf16.gmra.mrb[0].mxu0 %v316
        %v369 = vpop.f32.mrb[0].mxu0
        %v370 = vadd.f32 %v249, %v369
        %v371 = vpop.f32.mrb[0].mxu0
        %v372 = vadd.f32 %v249, %v371
        %v373 = vpop.f32.mrb[0].mxu0
        %v374 = vadd.f32 %v254, %v373
        %v375 = vpop.f32.mrb[0].mxu0
        %v376 = vadd.f32 %v254, %v375
        %377 = vdwg.mxu0
        %v378 = vmax.f32 %v360, 0.0
        %v379 = vmax.f32 %v362, 0.0
        %v380 = vmax.f32 %v364, 0.0
        %v381 = vmax.f32 %v366, 0.0
        %v382 = vmax.f32 %v370, 0.0
        %v383 = vmax.f32 %v372, 0.0
        %v384 = vmax.f32 %v374, 0.0
        %v385 = vmax.f32 %v376, 0.0
        %v386 = vadd.f32 %v378, %v379
        %387 = vadd.xlane.f32.xlu0 %v386
        %v388 = vpop.xlane.xlu0 %387
        %v389 = vadd.f32 %v380, %v381
        %390 = vadd.xlane.f32.xlu0 %v389
        %v391 = vpop.xlane.xlu0 %390
        %v392 = vadd.f32 %v382, %v383
        %393 = vadd.xlane.f32.xlu0 %v392
        %v394 = vpop.xlane.xlu0 %393
        %v395 = vadd.f32 %v384, %v385
        %396 = vadd.xlane.f32.xlu0 %v395
        %v397 = vpop.xlane.xlu0 %396
        %v398 = vmul.f32 %v388, 0.00390625
        %v399 = vmul.f32 %v391, 0.00390625
        %v400 = vmul.f32 %v394, 0.00390625
        %v401 = vmul.f32 %v397, 0.00390625
        %v402 = vadd.f32 %v398, %v400
        %v403 = vadd.f32 %v399, %v401
        %404 = vrot.lane.b32.xlu0 %v228, 112
        %v405 = vpop.permute.xlu0 %404
        %406 = vrot.lane.b32.xlu0 %v229, 112
        %v407 = vpop.permute.xlu0 %406
        %408 = vrot.lane.b32.xlu0 %v230, 112
        %v409 = vpop.permute.xlu0 %408
        %410 = vrot.lane.b32.xlu0 %v231, 112
        %v411 = vpop.permute.xlu0 %410
        %vm416 = vcmask 130048
        %v417 = vsel %vm416, %v228, 0
        %v419 = vsel %vm416, %v229, 0
        %v421 = vsel %vm416, %v230, 0
        %v423 = vsel %vm416, %v231, 0
        %425 = vmatprep.subr.mxu0 0.0
        %426 = vmatpush1.msra.mxu0 %v402
        %427 = vmatprep.subr.mxu0 0.0
        %428 = vmatpush1.msra.mxu0 %v403
        %429 = vmatprep.subr.mxu0 0.0
        %430 = vmatpush1.msra.mxu0 0.0
        %431 = vmatprep.subr.mxu0 0.0
        %432 = vmatpush1.msra.mxu0 0.0
        %433 = vmatprep.subr.mxu0 0.0
        %434 = vmatpush1.msra.mxu0 0.0
        %435 = vmatprep.subr.mxu0 0.0
        %436 = vmatpush1.msra.mxu0 0.0
        %437 = vmatprep.subr.mxu0 0.0
        %438 = vmatpush1.msra.mxu0 0.0
        %439 = vmatprep.subr.mxu0 0.0
        %440 = vmatpush1.msra.mxu0 0.0
        %441 = vmatprep.subr.mxu0 0.0
        %442 = vmatpush1.msra.mxu0 0.0
        %443 = vmatprep.subr.mxu0 0.0
        %444 = vmatpush1.msra.mxu0 0.0
        %445 = vmatprep.subr.mxu0 0.0
        %446 = vmatpush1.msra.mxu0 0.0
        %447 = vmatprep.subr.mxu0 0.0
        %448 = vmatpush1.msra.mxu0 0.0
        %449 = vmatprep.subr.mxu0 0.0
        %450 = vmatpush1.msra.mxu0 0.0
        %451 = vmatprep.subr.mxu0 0.0
        %452 = vmatpush1.msra.mxu0 0.0
        %453 = vmatprep.subr.mxu0 0.0
        %454 = vmatpush1.msra.mxu0 0.0
        %455 = vmatprep.subr.mxu0 0.0
        %456 = vmatpush1.msra.mxu0 0.0
        %457 = vmatprep.subr.mxu0 0.0
        %458 = vmatpush1.msra.mxu0 0.0
        %459 = vmatprep.subr.mxu0 0.0
        %460 = vmatpush1.msra.mxu0 0.0
        %461 = vmatprep.subr.mxu0 0.0
        %462 = vmatpush1.msra.mxu0 0.0
        %463 = vmatprep.subr.mxu0 0.0
        %464 = vmatpush1.msra.mxu0 0.0
        %465 = vmatprep.subr.mxu0 0.0
        %466 = vmatpush1.msra.mxu0 0.0
        %467 = vmatprep.subr.mxu0 0.0
        %468 = vmatpush1.msra.mxu0 0.0
        %469 = vmatprep.subr.mxu0 0.0
        %470 = vmatpush1.msra.mxu0 0.0
        %471 = vmatprep.subr.mxu0 0.0
        %472 = vmatpush1.msra.mxu0 0.0
        %473 = vmatprep.subr.mxu0 0.0
        %474 = vmatpush1.msra.mxu0 0.0
        %475 = vmatprep.subr.mxu0 0.0
        %476 = vmatpush1.msra.mxu0 0.0
        %477 = vmatprep.subr.mxu0 0.0
        %478 = vmatpush1.msra.mxu0 0.0
        %479 = vmatprep.subr.mxu0 0.0
        %480 = vmatpush1.msra.mxu0 0.0
        %481 = vmatprep.subr.mxu0 0.0
        %482 = vmatpush1.msra.mxu0 0.0
        %483 = vmatprep.subr.mxu0 0.0
        %484 = vmatpush1.msra.mxu0 0.0
        %485 = vmatprep.subr.mxu0 0.0
        %486 = vmatpush1.msra.mxu0 0.0
        %487 = vmatprep.subr.mxu0 0.0
        %488 = vmatpush1.msra.mxu0 0.0
        %489 = vmatprep.mubr.f32.mxu0 0.0
        %490 = vmatmul.mubr.f32.gmra.mrb[0].mxu0 %v417
        %v491 = vpop.f32.mrb[0].mxu0
        %v492 = vadd.f32 %v405, %v491
        %v493 = vpop.f32.mrb[0].mxu0
        %494 = vmatprep.mubr.f32.mxu0 0.0
        %495 = vmatmul.mubr.f32.gmra.mrb[0].mxu0 %v419
        %v496 = vpop.f32.mrb[0].mxu0
        %v497 = vadd.f32 %v407, %v496
        %v498 = vpop.f32.mrb[0].mxu0
        %499 = vmatprep.mubr.f32.mxu0 0.0
        %500 = vmatmul.mubr.f32.gmra.mrb[0].mxu0 %v421
        %v501 = vpop.f32.mrb[0].mxu0
        %v502 = vadd.f32 %v409, %v501
        %v503 = vpop.f32.mrb[0].mxu0
        %504 = vmatprep.mubr.f32.mxu0 0.0
        %505 = vmatmul.mubr.f32.gmra.mrb[0].mxu0 %v423
        %v506 = vpop.f32.mrb[0].mxu0
        %v507 = vadd.f32 %v411, %v506
        %v508 = vpop.f32.mrb[0].mxu0
        %509 = vdwg.mxu0
        %v510 = vmax.f32 %v492, 0.0
        %v511 = vmax.f32 %v497, 0.0
        %v512 = vmax.f32 %v502, 0.0
        %v513 = vmax.f32 %v507, 0.0
        %514 = vrot.lane.b32.xlu0 %v228, 111
        %v515 = vpop.permute.xlu0 %514
        %516 = vrot.lane.b32.xlu0 %v229, 111
        %v517 = vpop.permute.xlu0 %516
        %518 = vrot.lane.b32.xlu0 %v230, 111
        %v519 = vpop.permute.xlu0 %518
        %520 = vrot.lane.b32.xlu0 %v231, 111
        %v521 = vpop.permute.xlu0 %520
        %522 = vrot.lane.b32.xlu0 %v228, 79
        %v523 = vpop.permute.xlu0 %522
        %524 = vrot.lane.b32.xlu0 %v229, 79
        %v525 = vpop.permute.xlu0 %524
        %526 = vrot.lane.b32.xlu0 %v230, 79
        %v527 = vpop.permute.xlu0 %526
        %528 = vrot.lane.b32.xlu0 %v231, 79
        %v529 = vpop.permute.xlu0 %528
        %vm534 = vcmask 261120
        %v535 = vsel %vm534, %v515, 0
        %v537 = vsel %vm534, %v517, 0
        %v539 = vsel %vm534, %v519, 0
        %v541 = vsel %vm534, %v521, 0
        %543 = vmatprep.subr.mxu0 0.0
        %544 = vmatpush1.msra.mxu0 %v510
        %545 = vmatprep.subr.mxu0 0.0
        %546 = vmatpush1.msra.mxu0 %v511
        %547 = vmatprep.subr.mxu0 0.0
        %548 = vmatpush1.msra.mxu0 %v512
        %549 = vmatprep.subr.mxu0 0.0
        %550 = vmatpush1.msra.mxu0 %v513
        %551 = vmatprep.subr.mxu0 0.0
        %552 = vmatpush1.msra.mxu0 0.0
        %553 = vmatprep.subr.mxu0 0.0
        %554 = vmatpush1.msra.mxu0 0.0
        %555 = vmatprep.subr.mxu0 0.0
        %556 = vmatpush1.msra.mxu0 0.0
        %557 = vmatprep.subr.mxu0 0.0
        %558 = vmatpush1.msra.mxu0 0.0
        %559 = vmatprep.subr.mxu0 0.0
        %560 = vmatpush1.msra.mxu0 0.0
        %561 = vmatprep.subr.mxu0 0.0
        %562 = vmatpush1.msra.mxu0 0.0
        %563 = vmatprep.subr.mxu0 0.0
        %564 = vmatpush1.msra.mxu0 0.0
        %565 = vmatprep.subr.mxu0 0.0
        %566 = vmatpush1.msra.mxu0 0.0
        %567 = vmatprep.subr.mxu0 0.0
        %568 = vmatpush1.msra.mxu0 0.0
        %569 = vmatprep.subr.mxu0 0.0
        %570 = vmatpush1.msra.mxu0 0.0
        %571 = vmatprep.subr.mxu0 0.0
        %572 = vmatpush1.msra.mxu0 0.0
        %573 = vmatprep.subr.mxu0 0.0
        %574 = vmatpush1.msra.mxu0 0.0
        %575 = vmatprep.subr.mxu0 0.0
        %576 = vmatpush1.msra.mxu0 0.0
        %577 = vmatprep.subr.mxu0 0.0
        %578 = vmatpush1.msra.mxu0 0.0
        %579 = vmatprep.subr.mxu0 0.0
        %580 = vmatpush1.msra.mxu0 0.0
        %581 = vmatprep.subr.mxu0 0.0
        %582 = vmatpush1.msra.mxu0 0.0
        %583 = vmatprep.subr.mxu0 0.0
        %584 = vmatpush1.msra.mxu0 0.0
        %585 = vmatprep.subr.mxu0 0.0
        %586 = vmatpush1.msra.mxu0 0.0
        %587 = vmatprep.subr.mxu0 0.0
        %588 = vmatpush1.msra.mxu0 0.0
        %589 = vmatprep.subr.mxu0 0.0
        %590 = vmatpush1.msra.mxu0 0.0
        %591 = vmatprep.subr.mxu0 0.0
        %592 = vmatpush1.msra.mxu0 0.0
        %593 = vmatprep.subr.mxu0 0.0
        %594 = vmatpush1.msra.mxu0 0.0
        %595 = vmatprep.subr.mxu0 0.0
        %596 = vmatpush1.msra.mxu0 0.0
        %597 = vmatprep.subr.mxu0 0.0
        %598 = vmatpush1.msra.mxu0 0.0
        %599 = vmatprep.subr.mxu0 0.0
        %600 = vmatpush1.msra.mxu0 0.0
        %601 = vmatprep.subr.mxu0 0.0
        %602 = vmatpush1.msra.mxu0 0.0
        %603 = vmatprep.subr.mxu0 0.0
        %604 = vmatpush1.msra.mxu0 0.0
        %605 = vmatprep.subr.mxu0 0.0
        %606 = vmatpush1.msra.mxu0 0.0
        %607 = vmatprep.mubr.f32.mxu0 0.0
        %608 = vmatmul.mubr.f32.gmra.mrb[0].mxu0 %v535
        %v609 = vpop.f32.mrb[0].mxu0
        %v610 = vadd.f32 %v523, %v609
        %v611 = vpop.f32.mrb[0].mxu0
        %612 = vmatprep.mubr.f32.mxu0 0.0
        %613 = vmatmul.mubr.f32.gmra.mrb[0].mxu0 %v537
        %v614 = vpop.f32.mrb[0].mxu0
        %v615 = vadd.f32 %v525, %v614
        %v616 = vpop.f32.mrb[0].mxu0
        %617 = vmatprep.mubr.f32.mxu0 0.0
        %618 = vmatmul.mubr.f32.gmra.mrb[0].mxu0 %v539
        %v619 = vpop.f32.mrb[0].mxu0
        %v620 = vadd.f32 %v527, %v619
        %v621 = vpop.f32.mrb[0].mxu0
        %622 = vmatprep.mubr.f32.mxu0 0.0
        %623 = vmatmul.mubr.f32.gmra.mrb[0].mxu0 %v541
        %v624 = vpop.f32.mrb[0].mxu0
        %v625 = vadd.f32 %v529, %v624
        %v626 = vpop.f32.mrb[0].mxu0
        %627 = vdwg.mxu0
        %v628 = vmax.f32 %v610, %v620
        %v629 = vmax.f32 %v615, %v625
        %v630 = vsub.f32 %v610, %v628
        %v631 = vsub.f32 %v615, %v629
        %v632 = vmul.f32 %v630, 1.442695
        %v633 = vpow.pop %v632
        %v634 = vmul.f32 %v631, 1.442695
        %v635 = vpow.pop %v634
        %v636 = vsub.f32 %v620, %v628
        %v637 = vsub.f32 %v625, %v629
        %v638 = vmul.f32 %v636, 1.442695
        %v639 = vpow.pop %v638
        %v640 = vmul.f32 %v637, 1.442695
        %v641 = vpow.pop %v640
        %v642 = vadd.f32 %v633, %v639
        %v643 = vadd.f32 %v635, %v641
        %v644 = vrcp.pop %v642
        %v645 = vrcp.pop %v643
        %v646 = vmul.f32 %v633, %v644
        %v647 = vmul.f32 %v635, %v645
        %v648 = vmul.f32 %v639, %v644
        %v649 = vmul.f32 %v641, %v645
        %651 = vset.pattern.permute.xlu0 0
        %652 = vperm.xlu0 %651, %v646
        %v653 = vpop.permute.xlu0 %652
        %656 = vset.pattern.permute.xlu0 0
        %657 = vperm.xlu0 %656, %v647
        %v658 = vpop.permute.xlu0 %657
        %v660 = vmul.f32 %v378, %v653
        %v661 = vmul.f32 %v379, %v653
        %v662 = vmul.f32 %v380, %v658
        %v663 = vmul.f32 %v381, %v658
        %665 = vset.pattern.permute.xlu0 0
        %666 = vperm.xlu0 %665, %v648
        %v667 = vpop.permute.xlu0 %666
        %670 = vset.pattern.permute.xlu0 0
        %671 = vperm.xlu0 %670, %v649
        %v672 = vpop.permute.xlu0 %671
        %v674 = vmul.f32 %v382, %v667
        %v675 = vmul.f32 %v383, %v667
        %v676 = vmul.f32 %v384, %v672
        %v677 = vmul.f32 %v385, %v672
        %v678 = vadd.f32 %v660, %v674
        %v679 = vadd.f32 %v661, %v675
        %v680 = vadd.f32 %v662, %v676
        %v681 = vadd.f32 %v663, %v677
        %682 = vst [vmem:[%s217] sm:$0xff] %v678
        %683 = vst [vmem:[%s217 + $0x8] sm:$0xff] %v679
        %684 = vst [vmem:[%s217 + $0x10] sm:$0xff] %v680
        %685 = vst [vmem:[%s217 + $0x18] sm:$0xff] %v681
        %s686 = sand.u32 %s97, 1
        %s687 = scalar_lea.sflag [#allocation4], %s686
        %s688 = sand.u32 %s97, 1
        %s689 = smul.addr %s688, 32
        %s690 = scalar_lea.vmem [#allocation8], %s689
        // Predicated region
        $region45: #{tpu_custom_call.1} parent=31 // pred_check
          %p691 = pneg %p107
        $region46: #{tpu_custom_call.1} parent=31 // pred_check_branch
          %693 = sbr.rel (%p691) target = $region48
        $region47: #{tpu_custom_call.1} parent=31 // pred_region
          %s695 = ssub.s32 512, 512
          %696 = vsyncadd %s687, %s695
          %s697 = smul.addr %s21, 4
          %s698 = smul.addr %s697, 128
          %s699 = scalar_lea.hbm %s3, %s698
          %s700 = sshll.u32 %s690, 4
          %s701 = int_to_ptr.vmem [resolvable:$true] %s700
          %706 = dma.vmem_to_hbm [thread:$0]  %s701, 512, %s699, %s687, 256, 256, 16
        $region48: #{tpu_custom_call.1} parent=31 // pred_fallthru
          _
      $region32: #{tpu_custom_call.1} parent=5 // pred_fallthru
        _
      %p707 = scmp.le.s32.totalorder 2, %s16
      // Predicated region
      $region49: #{tpu_custom_call.1} parent=5 // pred_check
        %p708 = pneg %p707
      $region50: #{tpu_custom_call.1} parent=5 // pred_check_branch
        %710 = sbr.rel (%p708) target = $region52
      $region51: #{tpu_custom_call.1} parent=5 // pred_region
        %s711 = ssub.s32 %s16, 2
        // Predicated region
        $region53: #{tpu_custom_call.1} parent=51 // pred_check
          %p712 = pneg %p113
        $region54: #{tpu_custom_call.1} parent=51 // pred_check_branch
          %714 = sbr.rel (%p712) target = $region56
        $region55: #{tpu_custom_call.1} parent=51 // pred_region
          %s715 = sand.u32 %s98, 1
          %s716 = scalar_lea.sflag [#allocation4], %s715
          %s717 = sand.u32 %s98, 1
          %s718 = smul.addr %s717, 32
          %s719 = scalar_lea.vmem [#allocation8], %s718
          %720 = dma.done %s716, 512
        $region56: #{tpu_custom_call.1} parent=51 // pred_fallthru
          _
      $region52: #{tpu_custom_call.1} parent=5 // pred_fallthru
        _
    $region6: #{tpu_custom_call.1} parent=1 // loop_footer
      %s20 = sadd.s32 1, %s16
    $region7: #{tpu_custom_call.1} parent=1 // loop_footer_branch
      %15 = sbr.rel target = $region3
    $region8: #{tpu_custom_call.1} parent=1 // loop_exit
      _
    %721 = vsyncpa [#allocation3], 1
    %s722 = scalar_lea.sflag [#allocation3], 1
    %723 = vsyncpa %s722, 1
    %724 = vsyncpa [#allocation6], 1
    %725 = vsyncpa [#allocation4], 1
    %s726 = scalar_lea.sflag [#allocation4], 1
    %727 = vsyncpa %s726, 1

</llo_original>
